<compile_context>
chip_gen: v7x
topology: tpu7x:2x2x1
jax: 0.10.0
libtpu: 0.0.40
codegen_flags: <defaults>
</compile_context>

<pallas_src>
import functools

import jax
import jax.numpy as jnp
from jax.experimental import pallas as pl
from jax.experimental.pallas import tpu as pltpu


def _round_up(n, m):
    return ((n + m - 1) // m) * m


def _pi_model_kernel(x_ref, wall_ref, ball_ref, wout_ref, bout_ref, o_ref,
                     *, degree, width):
    """Implements, for one (TM, d) block of x:
         H  = relu(x @ W_all + b_all)          # one fused MXU matmul
         y  = H[:, 0:W]
         for i in 1..degree-1:  y = y * H[:, i*W:(i+1)*W] + y
         out = sum(y * w_out_row, axis=-1) + b_out   # VPU mul + lane reduce
    """
    x = x_ref[...]                                            # (TM, d) f32

    # One wide matmul covering all `degree` hidden layers at once.
    h = jnp.dot(x, wall_ref[...], preferred_element_type=jnp.float32)
    h = jnp.maximum(h + ball_ref[...], 0.0)                   # (TM, degree*W)

    # pi-composition over the degree chunks (static, lane-aligned slices).
    y = h[:, 0:width]
    for i in range(1, degree):
        hi = h[:, i * width:(i + 1) * width]
        y = y * hi + y

    # Output layer WIDTH -> 1 on the VPU/XLU (avoids a 1-column MXU matmul).
    out = jnp.sum(y * wout_ref[...], axis=-1, keepdims=True) + bout_ref[...]
    o_ref[...] = out.astype(o_ref.dtype)


def pi_model_ntk_forward(x, w, b, w_out, b_out, *, tm=512):
    """x: (N, d); w: (degree, d, WIDTH); b: (degree, 1, WIDTH);
       w_out: (WIDTH, 1); b_out: (1, 1).  Returns (N, 1) float32."""
    degree, d, width = w.shape
    n = x.shape[0]

    # ---- wrapper-side layout plumbing (no extra compute in the kernel) ----
    # Fuse hidden-layer weights: W_all[:, i*W:(i+1)*W] == w[i]  -> (d, degree*W)
    w_all = jnp.transpose(w, (1, 0, 2)).reshape(d, degree * width)
    # Concatenate biases into one (1, degree*W) row -> single broadcast add.
    b_all = b.reshape(1, degree * width)
    # Output weights as a (1, WIDTH) row for the VPU multiply + lane reduce.
    w_out_row = jnp.reshape(w_out, (1, width))
    b_out = jnp.reshape(b_out, (1, 1))

    # ---- batch tiling: TM multiple of 8, pad N up to a multiple of TM ----
    tm_eff = min(int(tm), _round_up(n, 8))
    tm_eff = max(8, _round_up(tm_eff, 8))
    n_pad = _round_up(n, tm_eff)
    if n_pad != n:
        x = jnp.pad(x, ((0, n_pad - n), (0, 0)))
    grid = (n_pad // tm_eff,)

    kernel = functools.partial(_pi_model_kernel, degree=degree, width=width)

    out = pl.pallas_call(
        kernel,
        out_shape=jax.ShapeDtypeStruct((n_pad, 1), jnp.float32),
        grid_spec=pltpu.PrefetchScalarGridSpec(
            num_scalar_prefetch=0,
            grid=grid,
            in_specs=[
                # x: tiled over N, pipelined/double-buffered by the grid.
                pl.BlockSpec((tm_eff, d), lambda i: (i, 0)),
                # Weights/biases: constant block index -> resident in VMEM.
                pl.BlockSpec((d, degree * width), lambda i: (0, 0)),
                pl.BlockSpec((1, degree * width), lambda i: (0, 0)),
                pl.BlockSpec((1, width), lambda i: (0, 0)),
                pl.BlockSpec((1, 1), lambda i: (0, 0)),
            ],
            out_specs=pl.BlockSpec((tm_eff, 1), lambda i: (i, 0)),
        ),
        compiler_params=pltpu.CompilerParams(
            # Batch tiles are independent -> megacore sharding on v7x.
            dimension_semantics=("parallel",),
            # Working set per tile is small (<~2 MiB even at TM=2048); stay
            # within v7x's 64 MiB physical / 32 MiB scoped VMEM.
            vmem_limit_bytes=32 * 1024 * 1024,
        ),
    )(x, w_all, b_all, w_out_row, b_out)

    return out[:n]


def pi_model_ntk_reference(x, w, b, w_out, b_out):
    """Pure-JAX reference matching the PyTorch forward."""
    degree = w.shape[0]
    y = jnp.maximum(x @ w[0] + b[0], 0.0)
    for i in range(1, degree):
        hi = jnp.maximum(x @ w[i] + b[i], 0.0)
        y = y * hi + y
    return y @ w_out + b_out


if __name__ == "__main__":
    # Small shapes consistent with the module: opt.d, opt.WIDTH, opt.degree, bias=True.
    D, WIDTH, DEGREE = 32, 128, 3

    key = jax.random.PRNGKey(0)
    k_x, k_w, k_b, k_wo, k_bo = jax.random.split(key, 5)

    # Deterministic parameter init (PyTorch-Linear-like uniform scale).
    w = jax.random.uniform(k_w, (DEGREE, D, WIDTH), dtype=jnp.float32,
                           minval=-1.0, maxval=1.0) / jnp.sqrt(D)
    b = jax.random.uniform(k_b, (DEGREE, 1, WIDTH), dtype=jnp.float32,
                           minval=-1.0, maxval=1.0) / jnp.sqrt(D)
    w_out = jax.random.uniform(k_wo, (WIDTH, 1), dtype=jnp.float32,
                               minval=-1.0, maxval=1.0) / jnp.sqrt(WIDTH)
    b_out = jax.random.uniform(k_bo, (1, 1), dtype=jnp.float32,
                               minval=-1.0, maxval=1.0) / jnp.sqrt(WIDTH)

    # Test 1: tiny batch (matches original module usage).
    N1 = 8
    x1 = jax.random.normal(k_x, (N1, D), dtype=jnp.float32)
    out1 = jax.block_until_ready(pi_model_ntk_forward(x1, w, b, w_out, b_out))
    ref1 = pi_model_ntk_reference(x1, w, b, w_out, b_out)
    assert out1.shape == (N1, 1)
    assert jnp.allclose(out1, ref1, atol=1e-4, rtol=1e-4), "mismatch vs reference (N=8)"

    # Test 2: ragged batch with multiple grid tiles (exercises padding + tiling).
    N2 = 50
    x2 = jax.random.normal(jax.random.PRNGKey(1), (N2, D), dtype=jnp.float32)
    out2 = jax.block_until_ready(
        pi_model_ntk_forward(x2, w, b, w_out, b_out, tm=16))
    ref2 = pi_model_ntk_reference(x2, w, b, w_out, b_out)
    assert out2.shape == (N2, 1)
    assert jnp.allclose(out2, ref2, atol=1e-4, rtol=1e-4), "mismatch vs reference (N=50)"

    print("KERNEL_OK")
</pallas_src>

<mosaic_0001>
module attributes {stable_mosaic.version = 11 : i64} {
  func.func @_pi_model_kernel(%arg0: i32, %arg1: memref<8x32xf32, #tpu.memory_space<vmem>>, %arg2: memref<32x384xf32, #tpu.memory_space<vmem>>, %arg3: memref<1x384xf32, #tpu.memory_space<vmem>>, %arg4: memref<1x128xf32, #tpu.memory_space<vmem>>, %arg5: memref<1x1xf32, #tpu.memory_space<vmem>>, %arg6: memref<8x1xf32, #tpu.memory_space<vmem>>) attributes {dimension_semantics = [#tpu.dimension_semantics<parallel>], iteration_bounds = array<i64: 1>, scalar_prefetch = 0 : i64, scratch_operands = 0 : i64, tpu.core_type = #tpu.core_type<tc>, window_params = [{transform_indices = @transform_0, window_bounds = array<i64: 8, 32>}, {pipeline_mode = #tpu.pipeline_mode<synchronous>, transform_indices = @transform_1, window_bounds = array<i64: 32, 384>}, {pipeline_mode = #tpu.pipeline_mode<synchronous>, transform_indices = @transform_2, window_bounds = array<i64: 1, 384>}, {pipeline_mode = #tpu.pipeline_mode<synchronous>, transform_indices = @transform_3, window_bounds = array<i64: 1, 128>}, {pipeline_mode = #tpu.pipeline_mode<synchronous>, transform_indices = @transform_4, window_bounds = array<i64: 1, 1>}, {transform_indices = @transform_5, window_bounds = array<i64: 8, 1>}]} {
    %c0 = arith.constant 0 : index
    %c0_0 = arith.constant 0 : index
    %0 = vector.load %arg1[%c0, %c0_0] : memref<8x32xf32, #tpu.memory_space<vmem>>, vector<8x32xf32>
    %c0_1 = arith.constant 0 : index
    %c0_2 = arith.constant 0 : index
    %1 = vector.load %arg2[%c0_1, %c0_2] : memref<32x384xf32, #tpu.memory_space<vmem>>, vector<32x384xf32>
    %cst = arith.constant dense<0.000000e+00> : vector<8x384xf32>
    %2 = tpu.matmul %0, %1, %cst {dimension_numbers = #tpu.dot_dimension_numbers<[1], [0], [0], [1], [0, 0, 1, 1], [], []>} : vector<8x32xf32>, vector<32x384xf32>, vector<8x384xf32> -> vector<8x384xf32>
    %c0_3 = arith.constant 0 : index
    %c0_4 = arith.constant 0 : index
    %3 = vector.load %arg3[%c0_3, %c0_4] : memref<1x384xf32, #tpu.memory_space<vmem>>, vector<1x384xf32>
    %4 = vector.broadcast %3 : vector<1x384xf32> to vector<8x384xf32>
    %5 = arith.addf %2, %4 : vector<8x384xf32>
    %cst_5 = arith.constant 0.000000e+00 : f32
    %6 = vector.broadcast %cst_5 : f32 to vector<8x384xf32>
    %7 = arith.maximumf %5, %6 : vector<8x384xf32>
    %8 = vector.extract_strided_slice %7 {offsets = [0, 0], sizes = [8, 128], strides = [1, 1]} : vector<8x384xf32> to vector<8x128xf32>
    %9 = vector.extract_strided_slice %7 {offsets = [0, 128], sizes = [8, 128], strides = [1, 1]} : vector<8x384xf32> to vector<8x128xf32>
    %10 = arith.mulf %8, %9 : vector<8x128xf32>
    %11 = arith.addf %10, %8 : vector<8x128xf32>
    %12 = vector.extract_strided_slice %7 {offsets = [0, 256], sizes = [8, 128], strides = [1, 1]} : vector<8x384xf32> to vector<8x128xf32>
    %13 = arith.mulf %11, %12 : vector<8x128xf32>
    %14 = arith.addf %13, %11 : vector<8x128xf32>
    %c0_6 = arith.constant 0 : index
    %c0_7 = arith.constant 0 : index
    %15 = vector.load %arg4[%c0_6, %c0_7] : memref<1x128xf32, #tpu.memory_space<vmem>>, vector<1x128xf32>
    %16 = vector.broadcast %15 : vector<1x128xf32> to vector<8x128xf32>
    %17 = arith.mulf %14, %16 : vector<8x128xf32>
    %cst_8 = arith.constant dense<0.000000e+00> : vector<8xf32>
    %18 = vector.multi_reduction <add>, %17, %cst_8 [1] : vector<8x128xf32> to vector<8xf32>
    %19 = vector.shape_cast %18 : vector<8xf32> to vector<8x1xf32>
    %c0_9 = arith.constant 0 : index
    %c0_10 = arith.constant 0 : index
    %20 = vector.load %arg5[%c0_9, %c0_10] : memref<1x1xf32, #tpu.memory_space<vmem>>, vector<1x1xf32>
    %21 = vector.broadcast %20 : vector<1x1xf32> to vector<8x1xf32>
    %22 = arith.addf %19, %21 : vector<8x1xf32>
    %c0_11 = arith.constant 0 : index
    %c0_12 = arith.constant 0 : index
    %23 = vector.load %arg6[%c0_11, %c0_12] : memref<8x1xf32, #tpu.memory_space<vmem>>, vector<8x1xf32>
    tpu.vector_store %arg6[%c0_11, %c0_12], %22 {strides = array<i32>} : memref<8x1xf32, #tpu.memory_space<vmem>>, vector<8x1xf32>,
    return
  }
  func.func @transform_0(%arg0: i32) -> (i32, i32) {
    %c0_i32 = arith.constant 0 : i32
    %c0_i32_0 = arith.constant 0 : i32
    return %arg0, %c0_i32 : i32, i32
  }
  func.func @transform_1(%arg0: i32) -> (i32, i32) {
    %c0_i32 = arith.constant 0 : i32
    %c0_i32_0 = arith.constant 0 : i32
    %c0_i32_1 = arith.constant 0 : i32
    return %c0_i32, %c0_i32_0 : i32, i32
  }
  func.func @transform_2(%arg0: i32) -> (i32, i32) {
    %c0_i32 = arith.constant 0 : i32
    %c0_i32_0 = arith.constant 0 : i32
    %c0_i32_1 = arith.constant 0 : i32
    return %c0_i32, %c0_i32_0 : i32, i32
  }
  func.func @transform_3(%arg0: i32) -> (i32, i32) {
    %c0_i32 = arith.constant 0 : i32
    %c0_i32_0 = arith.constant 0 : i32
    %c0_i32_1 = arith.constant 0 : i32
    return %c0_i32, %c0_i32_0 : i32, i32
  }
  func.func @transform_4(%arg0: i32) -> (i32, i32) {
    %c0_i32 = arith.constant 0 : i32
    %c0_i32_0 = arith.constant 0 : i32
    %c0_i32_1 = arith.constant 0 : i32
    return %c0_i32, %c0_i32_0 : i32, i32
  }
  func.func @transform_5(%arg0: i32) -> (i32, i32) {
    %c0_i32 = arith.constant 0 : i32
    %c0_i32_0 = arith.constant 0 : i32
    return %arg0, %c0_i32 : i32, i32
  }
}

</mosaic_0001>

<llo_original>
// kernel: tpu_custom_call.1
$region0: #{tpu_custom_call.1}
  #allocation0 [shape = 'u32[]', space=smem, size = 0x4, offset = 0x4, fixed_abs, tag = 'smem constant byte address 0x4 - core index']
  #allocation1 [shape = 'u32[144,128]{1,0:T(1,128)}', space=vmem, size = 0x12000, scoped, tag = 'internal scratch']
  #allocation2 [shape = 'f32[1,1]{1,0:T(1,128)S(1)}', space=vmem, size = 0x200, scoped, tag = 'scoped memory for tpu_custom_call.1']
  %s0 = inlined_call_operand.hbm [shape: f32[8,32], index: 0, kind: input, shape index: {}]
  %s1 = inlined_call_operand.hbm [shape: f32[32,384], index: 1, kind: input, shape index: {}]
  %s2 = inlined_call_operand.vmem [shape: f32[1,384], index: 2, kind: input, shape index: {}]
  %s3 = inlined_call_operand.vmem [shape: f32[1,128], index: 3, kind: input, shape index: {}]
  %s4 = inlined_call_operand.<no memory space> [shape: f32[1,1], index: 4, kind: input, shape index: {}]
  %s5 = inlined_call_operand.vmem [shape: f32[8,1], index: 5, kind: output, shape index: {}]
  %s6 = sld [smem:[#allocation0]]
  $region38: #{tpu_custom_call.1} parent=0
    _
  %s8 = ssub.s32 1, %s6
  %s9 = scalar_select 0, %s8, %s6
  %v10 = vstv %s4
  %11 = vst [vmem:[#allocation2] sm:$0x1] %v10
  $region1: #{tpu_custom_call.1} parent=0
    #allocation3 [shape = 'u8[4096]{0}', space=vmem, size = 0x1000, scoped, tag = 'input window, operand 0, single buffered']
    #allocation4 [shape = 's32[1]{0}', space=sflag, size = 0x4, scoped, tag = 'scoped memory for tpu_custom_call.1']
    #allocation5 [shape = 'u8[49152]{0}', space=vmem, size = 0xc000, scoped, tag = 'input window, operand 1, single buffered']
    #allocation6 [shape = 's32[1]{0}', space=sflag, size = 0x4, scoped, tag = 'scoped memory for tpu_custom_call.1']
    %12 = vsyncpa [#allocation4], 0
    %13 = vsyncpa [#allocation6], 0
    // Predicated region
    $region2: #{tpu_custom_call.1} parent=1 // pred_check
      _
    $region3: #{tpu_custom_call.1} parent=1 // pred_check_branch
      %15 = sbr.rel (0) target = $region5
    $region4: #{tpu_custom_call.1} parent=1 // pred_region
      %s17 = ssub.s32 128, 128
      %18 = vsyncadd [#allocation4], %s17
      %s20 = sshll.u32 [#allocation3], 4
      %s21 = int_to_ptr.vmem [resolvable:$true] %s20
      %23 = dma.hbm_to_vmem [thread:$0]  %s0, 128, %s21, [#allocation4]
    $region5: #{tpu_custom_call.1} parent=1 // pred_fallthru
      _
    // Predicated region
    $region6: #{tpu_custom_call.1} parent=1 // pred_check
      _
    $region7: #{tpu_custom_call.1} parent=1 // pred_check_branch
      %25 = sbr.rel (0) target = $region9
    $region8: #{tpu_custom_call.1} parent=1 // pred_region
      %s27 = ssub.s32 1536, 1536
      %28 = vsyncadd [#allocation6], %s27
      %s29 = sshll.u32 [#allocation5], 4
      %s30 = int_to_ptr.vmem [resolvable:$true] %s29
      %35 = dma.hbm_to_vmem [thread:$0]  %s1, 1536, %s30, [#allocation6], 384, 384, 24
    $region9: #{tpu_custom_call.1} parent=1 // pred_fallthru
      _
    // Predicated region
    $region10: #{tpu_custom_call.1} parent=1 // pred_check
      _
    $region11: #{tpu_custom_call.1} parent=1 // pred_check_branch
      %37 = sbr.rel (0) target = $region13
    $region12: #{tpu_custom_call.1} parent=1 // pred_region
      _
    $region13: #{tpu_custom_call.1} parent=1 // pred_fallthru
      _
    // Predicated region
    $region14: #{tpu_custom_call.1} parent=1 // pred_check
      _
    $region15: #{tpu_custom_call.1} parent=1 // pred_check_branch
      %39 = sbr.rel (0) target = $region17
    $region16: #{tpu_custom_call.1} parent=1 // pred_region
      _
    $region17: #{tpu_custom_call.1} parent=1 // pred_fallthru
      _
    // Predicated region
    $region18: #{tpu_custom_call.1} parent=1 // pred_check
      _
    $region19: #{tpu_custom_call.1} parent=1 // pred_check_branch
      %41 = sbr.rel (0) target = $region21
    $region20: #{tpu_custom_call.1} parent=1 // pred_region
      _
    $region21: #{tpu_custom_call.1} parent=1 // pred_fallthru
      _
    // Predicated region
    $region22: #{tpu_custom_call.1} parent=1 // pred_check
      _
    $region23: #{tpu_custom_call.1} parent=1 // pred_check_branch
      %43 = sbr.rel (0) target = $region25
    $region24: #{tpu_custom_call.1} parent=1 // pred_region
      %44 = dma.done [#allocation4], 128
    $region25: #{tpu_custom_call.1} parent=1 // pred_fallthru
      _
    // Predicated region
    $region26: #{tpu_custom_call.1} parent=1 // pred_check
      _
    $region27: #{tpu_custom_call.1} parent=1 // pred_check_branch
      %46 = sbr.rel (0) target = $region29
    $region28: #{tpu_custom_call.1} parent=1 // pred_region
      %47 = dma.done [#allocation6], 1536
    $region29: #{tpu_custom_call.1} parent=1 // pred_fallthru
      _
    %v48 = vld [vmem:[#allocation3] sm:$0xff]
    %v49 = vld [vmem:[#allocation5] sm:$0xff]
    %v50 = vld [vmem:[#allocation5 + $0x8] sm:$0xff]
    %v51 = vld [vmem:[#allocation5 + $0x10] sm:$0xff]
    %v52 = vld [vmem:[#allocation5 + $0x18] sm:$0xff]
    %v53 = vld [vmem:[#allocation5 + $0x20] sm:$0xff]
    %v54 = vld [vmem:[#allocation5 + $0x28] sm:$0xff]
    %v55 = vld [vmem:[#allocation5 + $0x30] sm:$0xff]
    %v56 = vld [vmem:[#allocation5 + $0x38] sm:$0xff]
    %v57 = vld [vmem:[#allocation5 + $0x40] sm:$0xff]
    %v58 = vld [vmem:[#allocation5 + $0x48] sm:$0xff]
    %v59 = vld [vmem:[#allocation5 + $0x50] sm:$0xff]
    %v60 = vld [vmem:[#allocation5 + $0x58] sm:$0xff]
    %v61 = vld [vmem:[%s2] sm:$0x7]
    %v63 = vlaneseq
    %v64 = vshrl.u32 %v63, 7
    %v65 = vsub.s32 0, %v64
    %v66 = vrot.slane %v61, %v65
    %v67 = vlaneseq
    %v68 = vshrl.u32 %v67, 7
    %v69 = vsub.s32 1, %v68
    %v70 = vrot.slane %v61, %v69
    %v71 = vlaneseq
    %v72 = vshrl.u32 %v71, 7
    %v73 = vsub.s32 2, %v72
    %v74 = vrot.slane %v61, %v73
    %vm78 = vcmask 261120
    %v80 = vsel %vm78, %v48, 0
    %82 = vmatprep.subr.mxu0 %v50
    %83 = vmatpush1.msra.mxu0 %v49
    %84 = vmatprep.subr.mxu0 %v53
    %85 = vmatpush1.msra.mxu0 %v52
    %86 = vmatprep.subr.mxu0 %v56
    %87 = vmatpush1.msra.mxu0 %v55
    %88 = vmatprep.subr.mxu0 %v59
    %89 = vmatpush1.msra.mxu0 %v58
    %90 = vmatprep.subr.mxu0 0.0
    %91 = vmatpush1.msra.mxu0 0.0
    %92 = vmatprep.subr.mxu0 0.0
    %93 = vmatpush1.msra.mxu0 0.0
    %94 = vmatprep.subr.mxu0 0.0
    %95 = vmatpush1.msra.mxu0 0.0
    %96 = vmatprep.subr.mxu0 0.0
    %97 = vmatpush1.msra.mxu0 0.0
    %98 = vmatprep.subr.mxu0 0.0
    %99 = vmatpush1.msra.mxu0 0.0
    %100 = vmatprep.subr.mxu0 0.0
    %101 = vmatpush1.msra.mxu0 0.0
    %102 = vmatprep.subr.mxu0 0.0
    %103 = vmatpush1.msra.mxu0 0.0
    %104 = vmatprep.subr.mxu0 0.0
    %105 = vmatpush1.msra.mxu0 0.0
    %106 = vmatprep.subr.mxu0 0.0
    %107 = vmatpush1.msra.mxu0 0.0
    %108 = vmatprep.subr.mxu0 0.0
    %109 = vmatpush1.msra.mxu0 0.0
    %110 = vmatprep.subr.mxu0 0.0
    %111 = vmatpush1.msra.mxu0 0.0
    %112 = vmatprep.subr.mxu0 0.0
    %113 = vmatpush1.msra.mxu0 0.0
    %114 = vmatprep.subr.mxu0 0.0
    %115 = vmatpush1.msra.mxu0 0.0
    %116 = vmatprep.subr.mxu0 0.0
    %117 = vmatpush1.msra.mxu0 0.0
    %118 = vmatprep.subr.mxu0 0.0
    %119 = vmatpush1.msra.mxu0 0.0
    %120 = vmatprep.subr.mxu0 0.0
    %121 = vmatpush1.msra.mxu0 0.0
    %122 = vmatprep.subr.mxu0 0.0
    %123 = vmatpush1.msra.mxu0 0.0
    %124 = vmatprep.subr.mxu0 0.0
    %125 = vmatpush1.msra.mxu0 0.0
    %126 = vmatprep.subr.mxu0 0.0
    %127 = vmatpush1.msra.mxu0 0.0
    %128 = vmatprep.subr.mxu0 0.0
    %129 = vmatpush1.msra.mxu0 0.0
    %130 = vmatprep.subr.mxu0 0.0
    %131 = vmatpush1.msra.mxu0 0.0
    %132 = vmatprep.subr.mxu0 0.0
    %133 = vmatpush1.msra.mxu0 0.0
    %134 = vmatprep.subr.mxu0 0.0
    %135 = vmatpush1.msra.mxu0 0.0
    %136 = vmatprep.subr.mxu0 0.0
    %137 = vmatpush1.msra.mxu0 0.0
    %138 = vmatprep.subr.mxu0 0.0
    %139 = vmatpush1.msra.mxu0 0.0
    %140 = vmatprep.subr.mxu0 0.0
    %141 = vmatpush1.msra.mxu0 0.0
    %142 = vmatprep.subr.mxu0 0.0
    %143 = vmatpush1.msra.mxu0 0.0
    %144 = vmatprep.subr.mxu0 0.0
    %145 = vmatpush1.msra.mxu0 0.0
    %146 = vmatprep.mubr.f32.mxu0 0.0
    %147 = vmatmul.mubr.f32.gmra.mrb[0].mxu0 %v80
    %v148 = vpop.f32.mrb[0].mxu0
    %v149 = vadd.f32 %v66, %v148
    %v150 = vpop.f32.mrb[0].mxu0
    %v151 = vadd.f32 %v70, %v150
    %152 = vdwg.mxu0
    %153 = vmatprep.subr.mxu0 0.0
    %154 = vmatpush1.msra.mxu0 %v51
    %155 = vmatprep.subr.mxu0 0.0
    %156 = vmatpush1.msra.mxu0 %v54
    %157 = vmatprep.subr.mxu0 0.0
    %158 = vmatpush1.msra.mxu0 %v57
    %159 = vmatprep.subr.mxu0 0.0
    %160 = vmatpush1.msra.mxu0 %v60
    %161 = vmatprep.subr.mxu0 0.0
    %162 = vmatpush1.msra.mxu0 0.0
    %163 = vmatprep.subr.mxu0 0.0
    %164 = vmatpush1.msra.mxu0 0.0
    %165 = vmatprep.subr.mxu0 0.0
    %166 = vmatpush1.msra.mxu0 0.0
    %167 = vmatprep.subr.mxu0 0.0
    %168 = vmatpush1.msra.mxu0 0.0
    %169 = vmatprep.subr.mxu0 0.0
    %170 = vmatpush1.msra.mxu0 0.0
    %171 = vmatprep.subr.mxu0 0.0
    %172 = vmatpush1.msra.mxu0 0.0
    %173 = vmatprep.subr.mxu0 0.0
    %174 = vmatpush1.msra.mxu0 0.0
    %175 = vmatprep.subr.mxu0 0.0
    %176 = vmatpush1.msra.mxu0 0.0
    %177 = vmatprep.subr.mxu0 0.0
    %178 = vmatpush1.msra.mxu0 0.0
    %179 = vmatprep.subr.mxu0 0.0
    %180 = vmatpush1.msra.mxu0 0.0
    %181 = vmatprep.subr.mxu0 0.0
    %182 = vmatpush1.msra.mxu0 0.0
    %183 = vmatprep.subr.mxu0 0.0
    %184 = vmatpush1.msra.mxu0 0.0
    %185 = vmatprep.subr.mxu0 0.0
    %186 = vmatpush1.msra.mxu0 0.0
    %187 = vmatprep.subr.mxu0 0.0
    %188 = vmatpush1.msra.mxu0 0.0
    %189 = vmatprep.subr.mxu0 0.0
    %190 = vmatpush1.msra.mxu0 0.0
    %191 = vmatprep.subr.mxu0 0.0
    %192 = vmatpush1.msra.mxu0 0.0
    %193 = vmatprep.subr.mxu0 0.0
    %194 = vmatpush1.msra.mxu0 0.0
    %195 = vmatprep.subr.mxu0 0.0
    %196 = vmatpush1.msra.mxu0 0.0
    %197 = vmatprep.subr.mxu0 0.0
    %198 = vmatpush1.msra.mxu0 0.0
    %199 = vmatprep.subr.mxu0 0.0
    %200 = vmatpush1.msra.mxu0 0.0
    %201 = vmatprep.subr.mxu0 0.0
    %202 = vmatpush1.msra.mxu0 0.0
    %203 = vmatprep.subr.mxu0 0.0
    %204 = vmatpush1.msra.mxu0 0.0
    %205 = vmatprep.subr.mxu0 0.0
    %206 = vmatpush1.msra.mxu0 0.0
    %207 = vmatprep.subr.mxu0 0.0
    %208 = vmatpush1.msra.mxu0 0.0
    %209 = vmatprep.subr.mxu0 0.0
    %210 = vmatpush1.msra.mxu0 0.0
    %211 = vmatprep.subr.mxu0 0.0
    %212 = vmatpush1.msra.mxu0 0.0
    %213 = vmatprep.subr.mxu0 0.0
    %214 = vmatpush1.msra.mxu0 0.0
    %215 = vmatprep.subr.mxu0 0.0
    %216 = vmatpush1.msra.mxu0 0.0
    %217 = vmatprep.mubr.f32.mxu0 0.0
    %218 = vmatmul.mubr.f32.gmra.mrb[0].mxu0 %v80
    %v219 = vpop.f32.mrb[0].mxu0
    %v220 = vadd.f32 %v74, %v219
    %v221 = vpop.f32.mrb[0].mxu0
    %222 = vdwg.mxu0
    %v223 = vmax.f32 %v149, 0.0
    %v224 = vmax.f32 %v151, 0.0
    %v225 = vmax.f32 %v220, 0.0
    %v226 = vmul.f32 %v223, %v224
    %v227 = vadd.f32 %v226, %v223
    %v228 = vmul.f32 %v227, %v225
    %v229 = vadd.f32 %v228, %v227
    %v230 = vld [vmem:[%s3] sm:$0x1]
    %v232 = vlaneseq
    %v233 = vshrl.u32 %v232, 7
    %v234 = vsub.s32 0, %v233
    %v235 = vrot.slane %v230, %v234
    %v237 = vmul.f32 %v229, %v235
    %238 = vadd.xlane.f32.xlu0 %v237
    %v239 = vpop.xlane.xlu0 %238
    %v240 = vld [vmem:[#allocation2] sm:$0x1]
    %v242 = vlaneseq
    %v243 = vshrl.u32 %v242, 7
    %v244 = vsub.s32 0, %v243
    %v245 = vrot.slane %v240, %v244
    %v247 = vadd.f32 %v239, %v245
    %vm248 = vcmask 7168
    %249 = vst.msk [vmem:[%s5] sm:$0xff] %vm248, %v247
    // Predicated region
    $region30: #{tpu_custom_call.1} parent=1 // pred_check
      _
    $region31: #{tpu_custom_call.1} parent=1 // pred_check_branch
      %251 = sbr.rel (0) target = $region33
    $region32: #{tpu_custom_call.1} parent=1 // pred_region
      _
    $region33: #{tpu_custom_call.1} parent=1 // pred_fallthru
      _
    // Predicated region
    $region34: #{tpu_custom_call.1} parent=1 // pred_check
      _
    $region35: #{tpu_custom_call.1} parent=1 // pred_check_branch
      %253 = sbr.rel (0) target = $region37
    $region36: #{tpu_custom_call.1} parent=1 // pred_region
      _
    $region37: #{tpu_custom_call.1} parent=1 // pred_fallthru
      _
    %254 = vsyncpa [#allocation4], 1
    %255 = vsyncpa [#allocation6], 1

</llo_original>
